<compile_context>
chip_gen: v5e
topology: v5e:2x2
jax: 0.10.0
libtpu: 0.0.40
codegen_flags: <defaults>
</compile_context>

<pallas_src>
import jax
import jax.numpy as jnp
from jax.experimental import pallas as pl
from jax.experimental.pallas import tpu as pltpu

LANE = 128
EPS = 1e-5       # nn.LayerNorm default
SLOPE = 0.01     # nn.LeakyReLU default negative_slope


def _round_up(x, m):
    return (x + m - 1) // m * m


def _leaky(x):
    return jnp.where(x >= 0, x, SLOPE * x)


def _layernorm(x, g, b):
    mu = jnp.mean(x, axis=-1, keepdims=True)
    var = jnp.mean((x - mu) * (x - mu), axis=-1, keepdims=True)
    return (x - mu) * jax.lax.rsqrt(var + EPS) * g + b


def _dot(a, b):
    # bf16 MXU inputs, f32 accumulation.
    return jnp.dot(a.astype(jnp.bfloat16), b.astype(jnp.bfloat16),
                   preferred_element_type=jnp.float32)


# ----------------------------- Pallas kernels -------------------------------

def _pronoun_kernel(pron_ref, wp1_ref, bp1_ref, gp_ref, betap_ref,
                    wp2_ref, bp2_ref, xp_ref):
    """ffnn_pronoun over B (padded) batch rows; output xp in bf16, Dh padded to 128."""
    hp = _dot(pron_ref[...], wp1_ref[...]) + bp1_ref[...]
    hp = _leaky(_layernorm(hp, gp_ref[...], betap_ref[...])).astype(jnp.bfloat16)
    xp = _dot(hp, wp2_ref[...]) + bp2_ref[...]
    xp_ref[...] = xp.astype(xp_ref.dtype)


def _head_kernel(xp_ref, ent_ref,
                 we1_ref, be1_ref, ge_ref, betae_ref, we2_ref, be2_ref,
                 wl1_ref, bl1_ref, wc_ref, bc_ref,
                 out_ref):
    """ffnn_entities + fused linear1(concat) + classifier over a tile of B*E rows."""
    # ffnn_entities: Linear(3H->H), LayerNorm(H), LeakyReLU, [Dropout], Linear(H->Dh_pad)
    he = _dot(ent_ref[...], we1_ref[...]) + be1_ref[...]
    he = _leaky(_layernorm(he, ge_ref[...], betae_ref[...])).astype(jnp.bfloat16)
    xe = (_dot(he, we2_ref[...]) + be2_ref[...]).astype(jnp.bfloat16)     # (Tr, Dh_pad)

    # linear1(cat([x_pron, x_ent], -1)) as ONE lane-dense matmul (K = 2*Dh_pad).
    xcat = jnp.concatenate([xp_ref[...], xe], axis=-1)                    # (Tr, 2*Dh_pad) bf16
    z = _leaky(_dot(xcat, wl1_ref[...]) + bl1_ref[...]).astype(jnp.bfloat16)  # (Tr, 512)

    # classifier, padded to 128 output lanes (lane-dense store).
    out = _dot(z, wc_ref[...]) + bc_ref[...]                              # (Tr, 128) f32
    out_ref[...] = out.astype(out_ref.dtype)


# ------------------------------ configuration -------------------------------

def _tile_config(R):
    """(tile_r, R_pad, vmem_limit_bytes) per TPU generation."""
    kind = ""
    try:
        kind = jax.devices()[0].device_kind.lower()
    except Exception:
        pass
    if "v6" in kind:
        max_tile, vmem = 512, 80 * 1024 * 1024     # 128 MiB physical
    elif "v5" in kind:
        max_tile, vmem = 256, 64 * 1024 * 1024     # 128 MiB physical, 16 MiB default scope
    else:
        # v7x (64 MiB VMEM per TC) or unknown: conservative budget.
        max_tile, vmem = 256, 48 * 1024 * 1024
    # bf16 packs 16 sublane rows per vreg -> 16-row alignment keeps vld/vst unmasked.
    tile_r = min(max_tile, _round_up(R, 16))
    if "v7" in kind:
        # 2 TensorCores per chip: prefer >=2 "parallel" row steps when possible.
        while _round_up(R, tile_r) // tile_r < 2 and tile_r > 16:
            tile_r = max(16, _round_up(tile_r // 2, 16))
    R_pad = _round_up(R, tile_r)
    return tile_r, R_pad, vmem


# --------------------------------- wrapper -----------------------------------

def entity_resolution_head(pron_emb, ent_emb, params):
    """pron_emb: (B, H) f32, ent_emb: (B, E, 3H) f32 -> (B, E, num_output) f32."""
    B, H = pron_emb.shape
    _, E, H3 = ent_emb.shape
    Dh = params["wp2"].shape[-1]
    num_output = params["bc"].shape[-1]

    Dh_pad = _round_up(Dh, LANE)
    nout_pad = _round_up(num_output, LANE)

    bf = lambda a: a.astype(jnp.bfloat16)
    f32 = lambda a: a.astype(jnp.float32)

    def pad_cols(w, n):
        return jnp.pad(w, ((0, 0), (0, n - w.shape[-1])))

    # ---- exact zero padding of Dh (lane alignment) and num_output (lane-dense store)
    wp2_p = bf(pad_cols(params["wp2"], Dh_pad))
    bp2_p = f32(pad_cols(params["bp2"], Dh_pad))
    we2_p = bf(pad_cols(params["we2"], Dh_pad))
    be2_p = f32(pad_cols(params["be2"], Dh_pad))

    wl1p_p = jnp.pad(params["wl1p"], ((0, Dh_pad - Dh), (0, 0)))
    wl1e_p = jnp.pad(params["wl1e"], ((0, Dh_pad - Dh), (0, 0)))
    wl1 = bf(jnp.concatenate([wl1p_p, wl1e_p], axis=0))          # (2*Dh_pad, 512)
    bl1 = f32(params["bl1"])

    wc_p = bf(pad_cols(params["wc"], nout_pad))
    bc_p = f32(pad_cols(params["bc"], nout_pad))

    # ---- stage 1: pronoun FFNN once per batch row (tiny single-step pallas_call)
    B_pad = _round_up(B, 16)
    pron_rows = bf(pron_emb)
    if B_pad != B:
        pron_rows = jnp.pad(pron_rows, ((0, B_pad - B), (0, 0)))

    xp = pl.pallas_call(
        _pronoun_kernel,
        out_shape=jax.ShapeDtypeStruct((B_pad, Dh_pad), jnp.bfloat16),
    )(pron_rows, bf(params["wp1"]), f32(params["bp1"]),
      f32(params["gp"]), f32(params["betap"]), wp2_p, bp2_p)

    # ---- stage 2: flatten batch x entities into the matmul row dimension
    R = B * E
    tile_r, R_pad, vmem_bytes = _tile_config(R)
    grid = (R_pad // tile_r,)

    xp_rows = jnp.repeat(xp[:B], E, axis=0)                       # (R, Dh_pad) bf16
    ent_rows = bf(ent_emb.reshape(R, H3))                         # (R, 3H)   bf16
    if R_pad != R:
        xp_rows = jnp.pad(xp_rows, ((0, R_pad - R), (0, 0)))
        ent_rows = jnp.pad(ent_rows, ((0, R_pad - R), (0, 0)))

    weights = [
        bf(params["we1"]), f32(params["be1"]), f32(params["ge"]), f32(params["betae"]),
        we2_p, be2_p, wl1, bl1, wc_p, bc_p,
    ]

    # Resident (constant-block-index) weights: single-buffered -> no wasted VMEM.
    def resident(a):
        return pl.BlockSpec(a.shape, lambda i: (0,) * a.ndim,
                            pipeline_mode=pl.Buffered(1))

    in_specs = [
        pl.BlockSpec((tile_r, Dh_pad), lambda i: (i, 0)),   # repeated xp rows (Dh-wide, not H-wide)
        pl.BlockSpec((tile_r, H3), lambda i: (i, 0)),       # flattened entity rows
    ] + [resident(w) for w in weights]

    out = pl.pallas_call(
        _head_kernel,
        out_shape=jax.ShapeDtypeStruct((R_pad, nout_pad), jnp.float32),
        grid_spec=pltpu.PrefetchScalarGridSpec(
            num_scalar_prefetch=0,
            grid=grid,
            in_specs=in_specs,
            out_specs=pl.BlockSpec((tile_r, nout_pad), lambda i: (i, 0)),
        ),
        compiler_params=pltpu.CompilerParams(
            dimension_semantics=("parallel",),
            vmem_limit_bytes=vmem_bytes,
        ),
    )(xp_rows, ent_rows, *weights)

    return out[:R, :num_output].reshape(B, E, num_output)


# --------------------- _retrieve_embeddings (JAX glue) ----------------------

def retrieve_embeddings(bert, ent_offsets, pron_offsets):
    """bert: (B, S, H); ent_offsets: (B, 2, E) int32 (starts, ends); pron_offsets: (B,) int32."""
    B, S, H = bert.shape
    pron = jnp.take_along_axis(bert, pron_offsets[:, None, None], axis=1)[:, 0, :]      # (B, H)

    starts = ent_offsets[:, 0, :]                                                       # (B, E)
    ends = ent_offsets[:, 1, :]                                                         # (B, E)
    start_emb = jnp.take_along_axis(bert, starts[..., None], axis=1)                    # (B, E, H)
    end_emb = jnp.take_along_axis(bert, jnp.maximum(ends - 1, 0)[..., None], axis=1)    # (B, E, H)

    pos = jnp.arange(S)
    span = (pos[None, None, :] >= starts[..., None]) & (pos[None, None, :] < ends[..., None])  # (B,E,S)
    count = jnp.maximum(span.sum(-1), 1).astype(bert.dtype)
    mean_emb = jnp.einsum("bes,bsh->beh", span.astype(bert.dtype), bert) / count[..., None]

    ent = jnp.concatenate([start_emb, end_emb, mean_emb], axis=-1)                      # (B, E, 3H)
    valid = (starts != 0) | (ends != 0)                                                 # (0,0) -> zeros(3H)
    ent = jnp.where(valid[..., None], ent, 0.0)
    return pron, ent


# ------------------------------- reference ----------------------------------

def _reference_head(pron, ent, p):
    """Mirrors the kernel's mixed precision (bf16 matmul inputs / intermediates, f32 acc & LN)."""
    bf16 = jnp.bfloat16

    def dot(a, b):
        return jnp.dot(a.astype(bf16), b.astype(bf16), preferred_element_type=jnp.float32)

    def leaky(x):
        return jnp.where(x >= 0, x, SLOPE * x)

    def ln(x, g, b):
        mu = x.mean(-1, keepdims=True)
        var = ((x - mu) ** 2).mean(-1, keepdims=True)
        return (x - mu) * jax.lax.rsqrt(var + EPS) * g + b

    hp = dot(pron, p["wp1"]) + p["bp1"]
    hp = leaky(ln(hp, p["gp"], p["betap"])).astype(bf16)
    xp = (dot(hp, p["wp2"]) + p["bp2"]).astype(bf16)                                    # (B, Dh)

    he = dot(ent, p["we1"]) + p["be1"]
    he = leaky(ln(he, p["ge"], p["betae"])).astype(bf16)
    xe = (dot(he, p["we2"]) + p["be2"]).astype(bf16)                                    # (B, E, Dh)

    xp = jnp.broadcast_to(xp[:, None, :], xe.shape)
    xcat = jnp.concatenate([xp, xe], axis=-1)                                           # (B, E, 2Dh)
    wl1 = jnp.concatenate([p["wl1p"], p["wl1e"]], axis=0)                               # (2Dh, 512)
    z = leaky(dot(xcat, wl1) + p["bl1"]).astype(bf16)
    return dot(z, p["wc"]) + p["bc"]


# --------------------------------- main --------------------------------------

if __name__ == "__main__":
    B, S, H = 2, 16, 32          # batch, sequence, bert_hidden_size
    E = 4                        # entities per example
    Dh = 16                      # args.head_hidden_size
    BIL = 512                    # bilinear_hidden_size (fixed in the module)
    NOUT = 2                     # args.num_output

    key = jax.random.PRNGKey(0)
    ks = jax.random.split(key, 16)
    u = lambda k, shape, s=0.05: jax.random.uniform(k, shape, jnp.float32, -s, s)

    params = {
        # ffnn_pronoun
        "wp1": u(ks[0], (H, H)), "bp1": u(ks[1], (1, H)),
        "gp": jnp.ones((1, H), jnp.float32), "betap": jnp.zeros((1, H), jnp.float32),
        "wp2": u(ks[2], (H, Dh)), "bp2": u(ks[3], (1, Dh)),
        # ffnn_entities
        "we1": u(ks[4], (3 * H, H)), "be1": u(ks[5], (1, H)),
        "ge": jnp.ones((1, H), jnp.float32), "betae": jnp.zeros((1, H), jnp.float32),
        "we2": u(ks[6], (H, Dh)), "be2": u(ks[7], (1, Dh)),
        # linear1 (split for the pronoun / entity halves of the concat)
        "wl1p": u(ks[8], (Dh, BIL)), "wl1e": u(ks[9], (Dh, BIL)), "bl1": u(ks[10], (1, BIL)),
        # classifier
        "wc": u(ks[11], (BIL, NOUT)), "bc": u(ks[12], (1, NOUT)),
    }

    bert_outputs = jax.random.normal(ks[13], (B, S, H), jnp.float32)
    entities_offsets = jnp.array(
        [[[1, 4, 0, 10], [3, 7, 0, 14]],     # batch 0: (starts, ends), one (0,0) padded entity
         [[2, 0, 6, 9], [5, 0, 8, 12]]],     # batch 1
        dtype=jnp.int32)                     # (B, 2, E)
    pronouns_offset = jnp.array([3, 5], dtype=jnp.int32)  # (B,)

    pron_emb, ent_emb = retrieve_embeddings(bert_outputs, entities_offsets, pronouns_offset)

    out = entity_resolution_head(pron_emb, ent_emb, params)
    out = jax.block_until_ready(out)

    ref = _reference_head(pron_emb, ent_emb, params)
    assert out.shape == (B, E, NOUT)
    assert jnp.allclose(out, ref, atol=5e-3, rtol=5e-3), "mismatch vs reference"

    print("KERNEL_OK")
</pallas_src>

<mosaic_0001>
module attributes {stable_mosaic.version = 11 : i64} {
  func.func @_pronoun_kernel(%arg0: memref<16x32xbf16, #tpu.memory_space<vmem>>, %arg1: memref<32x32xbf16, #tpu.memory_space<vmem>>, %arg2: memref<1x32xf32, #tpu.memory_space<vmem>>, %arg3: memref<1x32xf32, #tpu.memory_space<vmem>>, %arg4: memref<1x32xf32, #tpu.memory_space<vmem>>, %arg5: memref<32x128xbf16, #tpu.memory_space<vmem>>, %arg6: memref<1x128xf32, #tpu.memory_space<vmem>>, %arg7: memref<16x128xbf16, #tpu.memory_space<vmem>>) attributes {dimension_semantics = [], scalar_prefetch = 0 : i64, scratch_operands = 0 : i64, tpu.core_type = #tpu.core_type<tc>} {
    %c0 = arith.constant 0 : index
    %c0_0 = arith.constant 0 : index
    %0 = vector.load %arg0[%c0, %c0_0] : memref<16x32xbf16, #tpu.memory_space<vmem>>, vector<16x32xbf16>
    %c0_1 = arith.constant 0 : index
    %c0_2 = arith.constant 0 : index
    %1 = vector.load %arg1[%c0_1, %c0_2] : memref<32x32xbf16, #tpu.memory_space<vmem>>, vector<32x32xbf16>
    %cst = arith.constant dense<0.000000e+00> : vector<16x32xf32>
    %2 = tpu.matmul %0, %1, %cst {dimension_numbers = #tpu.dot_dimension_numbers<[1], [0], [0], [1], [0, 0, 1, 1], [], []>} : vector<16x32xbf16>, vector<32x32xbf16>, vector<16x32xf32> -> vector<16x32xf32>
    %c0_3 = arith.constant 0 : index
    %c0_4 = arith.constant 0 : index
    %3 = vector.load %arg2[%c0_3, %c0_4] : memref<1x32xf32, #tpu.memory_space<vmem>>, vector<1x32xf32>
    %4 = vector.broadcast %3 : vector<1x32xf32> to vector<16x32xf32>
    %5 = arith.addf %2, %4 : vector<16x32xf32>
    %c0_5 = arith.constant 0 : index
    %c0_6 = arith.constant 0 : index
    %6 = vector.load %arg3[%c0_5, %c0_6] : memref<1x32xf32, #tpu.memory_space<vmem>>, vector<1x32xf32>
    %c0_7 = arith.constant 0 : index
    %c0_8 = arith.constant 0 : index
    %7 = vector.load %arg4[%c0_7, %c0_8] : memref<1x32xf32, #tpu.memory_space<vmem>>, vector<1x32xf32>
    %cst_9 = arith.constant dense<0.000000e+00> : vector<16xf32>
    %8 = vector.multi_reduction <add>, %5, %cst_9 [1] : vector<16x32xf32> to vector<16xf32>
    %9 = vector.shape_cast %8 : vector<16xf32> to vector<16x1xf32>
    %cst_10 = arith.constant 3.200000e+01 : f32
    %10 = vector.broadcast %cst_10 : f32 to vector<16x1xf32>
    %11 = arith.divf %9, %10 : vector<16x1xf32>
    %12 = vector.broadcast %11 : vector<16x1xf32> to vector<16x32xf32>
    %13 = arith.subf %5, %12 : vector<16x32xf32>
    %14 = vector.broadcast %11 : vector<16x1xf32> to vector<16x32xf32>
    %15 = arith.subf %5, %14 : vector<16x32xf32>
    %16 = arith.mulf %13, %15 : vector<16x32xf32>
    %cst_11 = arith.constant dense<0.000000e+00> : vector<16xf32>
    %17 = vector.multi_reduction <add>, %16, %cst_11 [1] : vector<16x32xf32> to vector<16xf32>
    %18 = vector.shape_cast %17 : vector<16xf32> to vector<16x1xf32>
    %cst_12 = arith.constant 3.200000e+01 : f32
    %19 = vector.broadcast %cst_12 : f32 to vector<16x1xf32>
    %20 = arith.divf %18, %19 : vector<16x1xf32>
    %21 = vector.broadcast %11 : vector<16x1xf32> to vector<16x32xf32>
    %22 = arith.subf %5, %21 : vector<16x32xf32>
    %cst_13 = arith.constant 9.99999974E-6 : f32
    %23 = vector.broadcast %cst_13 : f32 to vector<16x1xf32>
    %24 = arith.addf %20, %23 : vector<16x1xf32>
    %25 = math.rsqrt %24 : vector<16x1xf32>
    %26 = vector.broadcast %25 : vector<16x1xf32> to vector<16x32xf32>
    %27 = arith.mulf %22, %26 : vector<16x32xf32>
    %28 = vector.broadcast %6 : vector<1x32xf32> to vector<16x32xf32>
    %29 = arith.mulf %27, %28 : vector<16x32xf32>
    %30 = vector.broadcast %7 : vector<1x32xf32> to vector<16x32xf32>
    %31 = arith.addf %29, %30 : vector<16x32xf32>
    %cst_14 = arith.constant 0.000000e+00 : f32
    %32 = vector.broadcast %cst_14 : f32 to vector<16x32xf32>
    %33 = arith.cmpf oge, %31, %32 : vector<16x32xf32>
    %cst_15 = arith.constant 0.00999999977 : f32
    %34 = vector.broadcast %cst_15 : f32 to vector<16x32xf32>
    %35 = arith.mulf %34, %31 : vector<16x32xf32>
    %36 = arith.select %33, %31, %35 : vector<16x32xi1>, vector<16x32xf32>
    %37 = arith.truncf %36 : vector<16x32xf32> to vector<16x32xbf16>
    %c0_16 = arith.constant 0 : index
    %c0_17 = arith.constant 0 : index
    %38 = vector.load %arg5[%c0_16, %c0_17] : memref<32x128xbf16, #tpu.memory_space<vmem>>, vector<32x128xbf16>
    %cst_18 = arith.constant dense<0.000000e+00> : vector<16x128xf32>
    %39 = tpu.matmul %37, %38, %cst_18 {dimension_numbers = #tpu.dot_dimension_numbers<[1], [0], [0], [1], [0, 0, 1, 1], [], []>} : vector<16x32xbf16>, vector<32x128xbf16>, vector<16x128xf32> -> vector<16x128xf32>
    %c0_19 = arith.constant 0 : index
    %c0_20 = arith.constant 0 : index
    %40 = vector.load %arg6[%c0_19, %c0_20] : memref<1x128xf32, #tpu.memory_space<vmem>>, vector<1x128xf32>
    %41 = vector.broadcast %40 : vector<1x128xf32> to vector<16x128xf32>
    %42 = arith.addf %39, %41 : vector<16x128xf32>
    %43 = arith.truncf %42 : vector<16x128xf32> to vector<16x128xbf16>
    %c0_21 = arith.constant 0 : index
    %c0_22 = arith.constant 0 : index
    %44 = vector.load %arg7[%c0_21, %c0_22] : memref<16x128xbf16, #tpu.memory_space<vmem>>, vector<16x128xbf16>
    tpu.vector_store %arg7[%c0_21, %c0_22], %43 {strides = array<i32>} : memref<16x128xbf16, #tpu.memory_space<vmem>>, vector<16x128xbf16>,
    return
  }
}

</mosaic_0001>

<llo_original>
// kernel: tpu_custom_call.1
$region0: #{tpu_custom_call.1}
  #allocation0 [shape = 'u32[]', space=smem, size = 0x4, offset = 0x4, fixed_abs, tag = 'smem constant byte address 0x4 - core index']
  #allocation1 [shape = 'u32[72,128]{1,0:T(1,128)}', space=vmem, size = 0x9000, scoped, tag = 'internal scratch']
  %s0 = inlined_call_operand.hbm [shape: bf16[16,32], index: 0, kind: input, shape index: {}]
  %s1 = inlined_call_operand.hbm [shape: bf16[32,32], index: 1, kind: input, shape index: {}]
  %s2 = inlined_call_operand.vmem [shape: f32[1,32], index: 2, kind: input, shape index: {}]
  %s3 = inlined_call_operand.vmem [shape: f32[1,32], index: 3, kind: input, shape index: {}]
  %s4 = inlined_call_operand.vmem [shape: f32[1,32], index: 4, kind: input, shape index: {}]
  %s5 = inlined_call_operand.hbm [shape: bf16[32,128], index: 5, kind: input, shape index: {}]
  %s6 = inlined_call_operand.vmem [shape: f32[1,128], index: 6, kind: input, shape index: {}]
  %s7 = inlined_call_operand.hbm [shape: bf16[16,128], index: 7, kind: output, shape index: {}]
  %s8 = sld [smem:[#allocation0]]
  $region50: #{tpu_custom_call.1} parent=0
    _
  %s10 = ssub.s32 1, %s8
  %s11 = scalar_select 0, %s10, %s8
  $region1: #{tpu_custom_call.1} parent=0
    #allocation2 [shape = 'u8[4096]{0}', space=vmem, size = 0x1000, scoped, tag = 'input window, operand 0, single buffered']
    #allocation3 [shape = 's32[1]{0}', space=sflag, size = 0x4, scoped, tag = 'scoped memory for tpu_custom_call.1']
    #allocation4 [shape = 's32[1]{0}', space=sflag, size = 0x4, scoped, tag = 'scoped memory for tpu_custom_call.1']
    #allocation5 [shape = 'u8[8192]{0}', space=vmem, size = 0x2000, scoped, tag = 'input window, operand 1, single buffered']
    #allocation6 [shape = 's32[1]{0}', space=sflag, size = 0x4, scoped, tag = 'scoped memory for tpu_custom_call.1']
    #allocation7 [shape = 'u8[8192]{0}', space=vmem, size = 0x2000, scoped, tag = 'input window, operand 5, single buffered']
    #allocation8 [shape = 'u8[4096]{0}', space=vmem, size = 0x1000, scoped, tag = 'output window, operand 0, single buffered']
    %12 = vsyncpa [#allocation3], 0
    %13 = vsyncpa [#allocation6], 0
    %14 = vsyncpa [#allocation4], 0
    // Predicated region
    $region2: #{tpu_custom_call.1} parent=1 // pred_check
      _
    $region3: #{tpu_custom_call.1} parent=1 // pred_check_branch
      %16 = sbr.rel (0) target = $region5
    $region4: #{tpu_custom_call.1} parent=1 // pred_region
      %18 = vsyncadd [#allocation3], 0
      %s19 = sshll.u32 %s0, 4
      %s20 = int_to_ptr.hbm [resolvable:$true] %s19
      %s21 = sshll.u32 [#allocation2], 4
      %s22 = int_to_ptr.vmem [resolvable:$true] %s21
      %27 = dma.hbm_to_vmem [thread:$0]  %s20, 128, %s22, [#allocation3], 64, 64, 4
    $region5: #{tpu_custom_call.1} parent=1 // pred_fallthru
      _
    // Predicated region
    $region6: #{tpu_custom_call.1} parent=1 // pred_check
      _
    $region7: #{tpu_custom_call.1} parent=1 // pred_check_branch
      %29 = sbr.rel (0) target = $region9
    $region8: #{tpu_custom_call.1} parent=1 // pred_region
      %31 = vsyncadd [#allocation6], 0
      %s32 = sshll.u32 %s1, 4
      %s33 = int_to_ptr.hbm [resolvable:$true] %s32
      %s34 = sshll.u32 [#allocation5], 4
      %s35 = int_to_ptr.vmem [resolvable:$true] %s34
      %40 = dma.hbm_to_vmem [thread:$0]  %s33, 256, %s35, [#allocation6], 64, 64, 4
    $region9: #{tpu_custom_call.1} parent=1 // pred_fallthru
      _
    // Predicated region
    $region10: #{tpu_custom_call.1} parent=1 // pred_check
      _
    $region11: #{tpu_custom_call.1} parent=1 // pred_check_branch
      %42 = sbr.rel (0) target = $region13
    $region12: #{tpu_custom_call.1} parent=1 // pred_region
      _
    $region13: #{tpu_custom_call.1} parent=1 // pred_fallthru
      _
    // Predicated region
    $region14: #{tpu_custom_call.1} parent=1 // pred_check
      _
    $region15: #{tpu_custom_call.1} parent=1 // pred_check_branch
      %44 = sbr.rel (0) target = $region17
    $region16: #{tpu_custom_call.1} parent=1 // pred_region
      _
    $region17: #{tpu_custom_call.1} parent=1 // pred_fallthru
      _
    // Predicated region
    $region18: #{tpu_custom_call.1} parent=1 // pred_check
      _
    $region19: #{tpu_custom_call.1} parent=1 // pred_check_branch
      %46 = sbr.rel (0) target = $region21
    $region20: #{tpu_custom_call.1} parent=1 // pred_region
      _
    $region21: #{tpu_custom_call.1} parent=1 // pred_fallthru
      _
    // Predicated region
    $region22: #{tpu_custom_call.1} parent=1 // pred_check
      _
    $region23: #{tpu_custom_call.1} parent=1 // pred_check_branch
      %48 = sbr.rel (0) target = $region25
    $region24: #{tpu_custom_call.1} parent=1 // pred_region
      %50 = vsyncadd [#allocation6], 0
      %s51 = sshll.u32 %s5, 4
      %s52 = int_to_ptr.hbm [resolvable:$true] %s51
      %s53 = sshll.u32 [#allocation7], 4
      %s54 = int_to_ptr.vmem [resolvable:$true] %s53
      %59 = dma.hbm_to_vmem [thread:$0]  %s52, 256, %s54, [#allocation6], 64, 64, 4
    $region25: #{tpu_custom_call.1} parent=1 // pred_fallthru
      _
    // Predicated region
    $region26: #{tpu_custom_call.1} parent=1 // pred_check
      _
    $region27: #{tpu_custom_call.1} parent=1 // pred_check_branch
      %61 = sbr.rel (0) target = $region29
    $region28: #{tpu_custom_call.1} parent=1 // pred_region
      _
    $region29: #{tpu_custom_call.1} parent=1 // pred_fallthru
      _
    // Predicated region
    $region30: #{tpu_custom_call.1} parent=1 // pred_check
      _
    $region31: #{tpu_custom_call.1} parent=1 // pred_check_branch
      %63 = sbr.rel (0) target = $region33
    $region32: #{tpu_custom_call.1} parent=1 // pred_region
      %65 = dma.done [#allocation3], 128
    $region33: #{tpu_custom_call.1} parent=1 // pred_fallthru
      _
    // Predicated region
    $region34: #{tpu_custom_call.1} parent=1 // pred_check
      _
    $region35: #{tpu_custom_call.1} parent=1 // pred_check_branch
      %67 = sbr.rel (0) target = $region37
    $region36: #{tpu_custom_call.1} parent=1 // pred_region
      %69 = dma.done [#allocation6], 256
    $region37: #{tpu_custom_call.1} parent=1 // pred_fallthru
      _
    // Predicated region
    $region38: #{tpu_custom_call.1} parent=1 // pred_check
      _
    $region39: #{tpu_custom_call.1} parent=1 // pred_check_branch
      %71 = sbr.rel (0) target = $region41
    $region40: #{tpu_custom_call.1} parent=1 // pred_region
      %73 = dma.done [#allocation6], 256
    $region41: #{tpu_custom_call.1} parent=1 // pred_fallthru
      _
    %v75 = vld [vmem:[#allocation2] sm:$0xf]
    %v76 = vld [vmem:[#allocation2 + $0x4] sm:$0xf]
    %v77 = vld [vmem:[#allocation5] sm:$0xf]
    %v78 = vld [vmem:[#allocation5 + $0x4] sm:$0xf]
    %v79 = vld [vmem:[#allocation5 + $0x8] sm:$0xf]
    %v80 = vld [vmem:[#allocation5 + $0xc] sm:$0xf]
    %v81 = vld [vmem:[%s2] sm:$0x1]
    %v83 = vperm.slane %v81, 0
    %v87 = vunpack.c.l.b16 %v75
    %v88 = vunpack.c.l.b16 %v76
    %v89 = vpack.c.b16 %v88, %v87
    %v94 = vunpack.c.l.b16 %v77
    %v95 = vunpack.c.l.b16 %v78
    %v96 = vunpack.c.l.b16 %v79
    %v97 = vunpack.c.l.b16 %v80
    %v98 = vpack.c.b16 %v95, %v94
    %v99 = vpack.c.b16 %v97, %v96
    %vm102 = vcmask 261120
    %v104 = vsel %vm102, %v89, 0
    %106 = vmatpush.bf16.msra.mxu0 0
    %107 = vmatpush.bf16.msra.mxu0 0
    %108 = vmatpush.bf16.msra.mxu0 0
    %109 = vmatpush.bf16.msra.mxu0 0
    %110 = vmatpush.bf16.msra.mxu0 0
    %111 = vmatpush.bf16.msra.mxu0 0
    %112 = vmatpush.bf16.msra.mxu0 %v99
    %113 = vmatpush.bf16.msra.mxu0 %v98
    %114 = vmatmul.bf16.gmra.mxu0 %v104
    %v115 = vpop.f32.mrf.mxu0
    %v116 = vadd.f32 %v83, %v115
    %v117 = vpop.f32.mrf.mxu0
    %v118 = vadd.f32 %v83, %v117
    %119 = vdwg.mxu0
    %v120 = vld [vmem:[%s3] sm:$0x1]
    %v121 = vld [vmem:[%s4] sm:$0x1]
    %v122 = vsel %vm102, %v116, 0.0
    %123 = vadd.xlane.f32.xlu0 %v122
    %v124 = vpop.xlane.xlu0 %123
    %v125 = vsel %vm102, %v118, 0.0
    %126 = vadd.xlane.f32.xlu0 %v125
    %v127 = vpop.xlane.xlu0 %126
    %v128 = vrcp.pop 32.0
    %v129 = vmul.f32 32.0, %v128
    %v130 = vsub.f32 1.0, %v129
    %v131 = vmul.f32 %v128, %v130
    %v132 = vadd.f32 %v128, %v131
    %vm133 = vweird.f32 %v128
    %v134 = vsel %vm133, %v128, %v132
    %v135 = vmul.f32 %v124, %v134
    %v136 = vmul.f32 %v127, %v134
    %v137 = vsub.f32 %v116, %v135
    %v138 = vsub.f32 %v118, %v136
    %v139 = vmul.f32 %v137, %v137
    %v140 = vmul.f32 %v138, %v138
    %v141 = vsel %vm102, %v139, 0.0
    %142 = vadd.xlane.f32.xlu0 %v141
    %v143 = vpop.xlane.xlu0 %142
    %v144 = vsel %vm102, %v140, 0.0
    %145 = vadd.xlane.f32.xlu0 %v144
    %v146 = vpop.xlane.xlu0 %145
    %v147 = vmul.f32 %v143, %v134
    %v148 = vmul.f32 %v146, %v134
    %v149 = vadd.f32 %v147, 1e-05
    %v150 = vadd.f32 %v148, 1e-05
    %v151 = vrsqrt.pop %v149
    %v152 = vmul.f32 %v151, %v149
    %v153 = vmul.f32 %v152, %v151
    %v154 = vmul.f32 0.5, %v153
    %v155 = vsub.f32 1.5, %v154
    %v156 = vmul.f32 %v151, %v155
    %vm157 = vweird.f32 %v149
    %vm158 = vweird.f32 %v151
    %vm159 = vmor %vm157, %vm158
    %v160 = vsel %vm159, %v151, %v156
    %v161 = vrsqrt.pop %v150
    %v162 = vmul.f32 %v161, %v150
    %v163 = vmul.f32 %v162, %v161
    %v164 = vmul.f32 0.5, %v163
    %v165 = vsub.f32 1.5, %v164
    %v166 = vmul.f32 %v161, %v165
    %vm167 = vweird.f32 %v150
    %vm168 = vweird.f32 %v161
    %vm169 = vmor %vm167, %vm168
    %v170 = vsel %vm169, %v161, %v166
    %v171 = vmul.f32 %v137, %v160
    %v172 = vmul.f32 %v138, %v170
    %v174 = vperm.slane %v120, 0
    %v176 = vmul.f32 %v171, %v174
    %v177 = vmul.f32 %v172, %v174
    %v179 = vperm.slane %v121, 0
    %v181 = vadd.f32 %v176, %v179
    %v182 = vadd.f32 %v177, %v179
    %vm183 = vcmp.ge.f32.partialorder %v181, 0.0
    %vm184 = vcmp.ge.f32.partialorder %v182, 0.0
    %v185 = vmul.f32 %v181, 0.01
    %v186 = vmul.f32 %v182, 0.01
    %v187 = vsel %vm183, %v181, %v185
    %v188 = vsel %vm184, %v182, %v186
    %v189 = vpack.c.bf16 %v188, %v187
    %v190 = vld [vmem:[#allocation7] sm:$0xf]
    %v191 = vld [vmem:[#allocation7 + $0x4] sm:$0xf]
    %v192 = vld [vmem:[#allocation7 + $0x8] sm:$0xf]
    %v193 = vld [vmem:[#allocation7 + $0xc] sm:$0xf]
    %v194 = vld [vmem:[%s6] sm:$0x1]
    %v196 = vperm.slane %v194, 0
    %v202 = vunpack.c.l.b16 %v190
    %v203 = vunpack.c.l.b16 %v191
    %v204 = vunpack.c.l.b16 %v192
    %v205 = vunpack.c.l.b16 %v193
    %v206 = vpack.c.b16 %v203, %v202
    %v207 = vpack.c.b16 %v205, %v204
    %v211 = vsel %vm102, %v189, 0
    %213 = vmatpush.bf16.msra.mxu0 0
    %214 = vmatpush.bf16.msra.mxu0 0
    %215 = vmatpush.bf16.msra.mxu0 0
    %216 = vmatpush.bf16.msra.mxu0 0
    %217 = vmatpush.bf16.msra.mxu0 0
    %218 = vmatpush.bf16.msra.mxu0 0
    %219 = vmatpush.bf16.msra.mxu0 %v207
    %220 = vmatpush.bf16.msra.mxu0 %v206
    %221 = vmatmul.bf16.gmra.mxu0 %v211
    %v222 = vpop.f32.mrf.mxu0
    %v223 = vadd.f32 %v196, %v222
    %v224 = vpop.f32.mrf.mxu0
    %v225 = vadd.f32 %v196, %v224
    %226 = vdwg.mxu0
    %v227 = vpack.c.bf16 %v223, %v223
    %v228 = vpack.c.bf16 %v225, %v225
    %229 = vst [vmem:[#allocation8] sm:$0xf] %v227
    %230 = vst [vmem:[#allocation8 + $0x4] sm:$0xf] %v228
    // Predicated region
    $region42: #{tpu_custom_call.1} parent=1 // pred_check
      _
    $region43: #{tpu_custom_call.1} parent=1 // pred_check_branch
      %232 = sbr.rel (0) target = $region45
    $region44: #{tpu_custom_call.1} parent=1 // pred_region
      %234 = vsyncadd [#allocation4], 0
      %s235 = sshll.u32 [#allocation8], 4
      %s236 = int_to_ptr.vmem [resolvable:$true] %s235
      %s237 = sshll.u32 %s7, 4
      %s238 = int_to_ptr.hbm [resolvable:$true] %s237
      %243 = dma.vmem_to_hbm [thread:$0]  %s236, 128, %s238, [#allocation4], 64, 64, 4
    $region45: #{tpu_custom_call.1} parent=1 // pred_fallthru
      _
    // Predicated region
    $region46: #{tpu_custom_call.1} parent=1 // pred_check
      _
    $region47: #{tpu_custom_call.1} parent=1 // pred_check_branch
      %245 = sbr.rel (0) target = $region49
    $region48: #{tpu_custom_call.1} parent=1 // pred_region
      %247 = dma.done [#allocation4], 128
    $region49: #{tpu_custom_call.1} parent=1 // pred_fallthru
      _
    %248 = vsyncpa [#allocation3], 1
    %249 = vsyncpa [#allocation6], 1
    %250 = vsyncpa [#allocation4], 1

</llo_original>
